<compile_context>
chip_gen: v6e
topology: v6e:2x2x1
jax: 0.10.0
libtpu: 0.0.40
codegen_flags: <defaults>
</compile_context>

<pallas_src>
import functools

import jax
import jax.numpy as jnp
from jax.experimental import pallas as pl
from jax.experimental.pallas import tpu as pltpu

HIDDEN = 128      # hidden width of every Linear in the module
HEAD_PAD = 128    # lane-dense padded width of the advantage head GEMM output


def _round_up(x, m):
    return (x + m - 1) // m * m


def _choose_tile_b(batch, tile_b):
    """Pick the batch tile: big tiles (per-grid-step overhead ~0.35us), but keep the
    grid >= 2 steps for large batches so v7x's two TensorCores both get work."""
    tile_b = _round_up(tile_b, 8)
    b8 = _round_up(batch, 8)
    tile = min(tile_b, b8)
    if tile >= b8 and b8 >= 256:
        tile = _round_up((b8 + 1) // 2, 8)   # split a single huge step into two
    return tile


def dueling_q_kernel(action_size,
                     x_ref, w1_ref, b1_ref, wh_ref, bh_ref,
                     wa2_ref, ba2_ref, wv2_ref, bv2_ref, q_ref):
    cdt = w1_ref.dtype   # MXU operand dtype: bf16 fast path (all generations) or f32

    # feature_layer: Linear(state_size, 128) + ReLU.  f32 accumulate, f32 epilogue.
    feat = jnp.dot(x_ref[...], w1_ref[...],
                   preferred_element_type=jnp.float32) + b1_ref[...]
    feat = jnp.maximum(feat, 0.0)

    # Fused value/advantage hidden layers: ONE full-width (128, 256) GEMM.
    # hid = [value_hidden || advantage_hidden]
    hid = jnp.dot(feat.astype(cdt), wh_ref[...],
                  preferred_element_type=jnp.float32) + bh_ref[...]
    hid = jnp.maximum(hid, 0.0)
    vh = hid[:, :HIDDEN]          # value-stream hidden   (f32)
    ah = hid[:, HIDDEN:]          # advantage-stream hidden (f32)

    # Advantage head: (128, HEAD_PAD) GEMM.  Columns [0, A) hold the advantages;
    # columns [A, HEAD_PAD) are exactly zero by construction (zero weights & bias).
    adv = jnp.dot(ah.astype(cdt), wa2_ref[...],
                  preferred_element_type=jnp.float32) + ba2_ref[...]

    # Value head: VPU multiply + lane reduce (XLU slot) in f32 -- a 128->1 matmul would
    # double the K dimension of the head GEMM for a single useful output column.
    v = jnp.sum(vh * wv2_ref[...], axis=-1, keepdims=True) + bv2_ref[...]

    # Dueling combine: Q = V + (A - mean(A)).  Padded advantage columns are exactly 0,
    # so a plain lane-sum divided by the true action count is the correct mean.
    a_mean = jnp.sum(adv, axis=-1, keepdims=True) * (1.0 / action_size)
    q = v + adv[:, :action_size] - a_mean                    # (tile_b, A)
    q_ref[...] = q.astype(q_ref.dtype)


def fuse_params(params, action_size, compute_dtype=jnp.bfloat16):
    """Pre-fuse per-stream weights for the kernel.

    MXU operand weights are cast to `compute_dtype` (bf16 is the fast rate class on
    v5e/v6e/v7x); biases and the value-head row stay f32 (f32 VPU epilogue).
    """
    assert 1 <= action_size <= HEAD_PAD, "action_size must be in [1, 128]"

    wh = jnp.concatenate([params["wv1"], params["wa1"]], axis=1)      # (128, 256)
    bh = jnp.concatenate([params["bv1"], params["ba1"]], axis=1)      # (1, 256)

    wa2 = jnp.zeros((HIDDEN, HEAD_PAD), jnp.float32)
    wa2 = wa2.at[:, :action_size].set(params["wa2"])                  # adv cols [0, A)
    ba2 = jnp.zeros((1, HEAD_PAD), jnp.float32)
    ba2 = ba2.at[:, :action_size].set(params["ba2"])

    return dict(
        w1=params["w1"].astype(compute_dtype),
        b1=params["b1"].astype(jnp.float32),
        wh=wh.astype(compute_dtype),
        bh=bh.astype(jnp.float32),
        wa2=wa2.astype(compute_dtype),
        ba2=ba2.astype(jnp.float32),
        wv2=params["wv2"].reshape(1, HIDDEN).astype(jnp.float32),     # value-head row
        bv2=params["bv2"].reshape(1, 1).astype(jnp.float32),
    )


def dueling_q_forward(state, fused, action_size, *, tile_b=1024):
    """state: (B, state_size) f32.  fused: output of fuse_params.  Returns (B, A) f32."""
    B, S = state.shape
    assert 1 <= action_size <= HEAD_PAD

    # Cast in the wrapper so the input DMA itself moves bf16 when compute_dtype=bf16.
    state = state.astype(fused["w1"].dtype)

    tile_b = _choose_tile_b(B, tile_b)
    B_pad = _round_up(B, tile_b)
    if B_pad != B:
        state = jnp.pad(state, ((0, B_pad - B), (0, 0)))
    # NOTE: padded rows (>= B) carry junk (bias-chain) Q values; they are sliced off below.

    w1, b1 = fused["w1"], fused["b1"]
    wh, bh = fused["wh"], fused["bh"]
    wa2, ba2 = fused["wa2"], fused["ba2"]
    wv2, bv2 = fused["wv2"], fused["bv2"]

    grid = (B_pad // tile_b,)
    flops = 2 * B_pad * (S * HIDDEN + HIDDEN * 2 * HIDDEN + HIDDEN * HEAD_PAD + HIDDEN)
    weight_bytes = sum(int(a.size) * a.dtype.itemsize
                       for a in (w1, b1, wh, bh, wa2, ba2, wv2, bv2))
    bytes_accessed = (int(state.size) * state.dtype.itemsize
                      + weight_bytes
                      + B_pad * action_size * 4)

    q_pad = pl.pallas_call(
        functools.partial(dueling_q_kernel, action_size),
        out_shape=jax.ShapeDtypeStruct((B_pad, action_size), jnp.float32),
        grid=grid,
        in_specs=[
            pl.BlockSpec((tile_b, S), lambda i: (i, 0)),               # state tile
            pl.BlockSpec((S, HIDDEN), lambda i: (0, 0)),               # w1 (resident)
            pl.BlockSpec((1, HIDDEN), lambda i: (0, 0)),               # b1
            pl.BlockSpec((HIDDEN, 2 * HIDDEN), lambda i: (0, 0)),      # fused hidden W
            pl.BlockSpec((1, 2 * HIDDEN), lambda i: (0, 0)),           # fused hidden b
            pl.BlockSpec((HIDDEN, HEAD_PAD), lambda i: (0, 0)),        # advantage head W
            pl.BlockSpec((1, HEAD_PAD), lambda i: (0, 0)),             # advantage head b
            pl.BlockSpec((1, HIDDEN), lambda i: (0, 0)),               # value head row (f32)
            pl.BlockSpec((1, 1), lambda i: (0, 0)),                    # value head bias
        ],
        out_specs=pl.BlockSpec((tile_b, action_size), lambda i: (i, 0)),  # compact Q
        compiler_params=pltpu.CompilerParams(
            dimension_semantics=("parallel",)),
        cost_estimate=pl.CostEstimate(flops=flops, transcendentals=0,
                                      bytes_accessed=bytes_accessed),
    )(state, w1, b1, wh, bh, wa2, ba2, wv2, bv2)

    return q_pad if B_pad == B else q_pad[:B]


def init_params(key, state_size, action_size):
    """PyTorch-style Linear init (uniform +-1/sqrt(fan_in)); weights stored as (in, out)."""
    def linear(k, fan_in, fan_out):
        kw, kb = jax.random.split(k)
        bound = 1.0 / jnp.sqrt(fan_in)
        w = jax.random.uniform(kw, (fan_in, fan_out), jnp.float32, -bound, bound)
        b = jax.random.uniform(kb, (1, fan_out), jnp.float32, -bound, bound)
        return w, b

    keys = jax.random.split(key, 5)
    w1, b1 = linear(keys[0], state_size, HIDDEN)
    wv1, bv1 = linear(keys[1], HIDDEN, HIDDEN)
    wv2, bv2 = linear(keys[2], HIDDEN, 1)
    wa1, ba1 = linear(keys[3], HIDDEN, HIDDEN)
    wa2, ba2 = linear(keys[4], HIDDEN, action_size)
    return dict(w1=w1, b1=b1, wv1=wv1, bv1=bv1, wv2=wv2, bv2=bv2,
                wa1=wa1, ba1=ba1, wa2=wa2, ba2=ba2)


def reference_forward(state, p):
    feat = jnp.maximum(state @ p["w1"] + p["b1"], 0.0)
    v = jnp.maximum(feat @ p["wv1"] + p["bv1"], 0.0) @ p["wv2"] + p["bv2"]
    a = jnp.maximum(feat @ p["wa1"] + p["ba1"], 0.0) @ p["wa2"] + p["ba2"]
    return v + (a - a.mean(axis=1, keepdims=True))


if __name__ == "__main__":
    key = jax.random.PRNGKey(0)
    k_small, k_big, k_params = jax.random.split(key, 3)

    state_size, action_size = 16, 4
    params = init_params(k_params, state_size, action_size)

    # --- small batch, f32 MXU operands: tight check vs the JAX reference ---------
    state_small = jax.random.normal(k_small, (8, state_size), jnp.float32)
    fused_f32 = fuse_params(params, action_size, compute_dtype=jnp.float32)
    q_small = jax.block_until_ready(dueling_q_forward(state_small, fused_f32, action_size))
    q_small_ref = reference_forward(state_small, params)
    assert q_small.shape == (8, action_size)
    assert jnp.allclose(q_small, q_small_ref, atol=1e-5, rtol=1e-5), "f32 mismatch (small)"

    # --- larger batch: exercises the 2-step parallel grid + batch padding --------
    state_big = jax.random.normal(k_big, (300, state_size), jnp.float32)
    q_big = jax.block_until_ready(dueling_q_forward(state_big, fused_f32, action_size))
    q_big_ref = reference_forward(state_big, params)
    assert q_big.shape == (300, action_size)
    assert jnp.allclose(q_big, q_big_ref, atol=1e-5, rtol=1e-5), "f32 mismatch (big)"

    # --- default bf16 MXU operands (fast rate class on v5e/v6e/v7x): loose check --
    fused_bf16 = fuse_params(params, action_size)   # compute_dtype=jnp.bfloat16
    q_bf16 = jax.block_until_ready(dueling_q_forward(state_big, fused_bf16, action_size))
    rel_err = jnp.max(jnp.abs(q_bf16 - q_big_ref)) / (jnp.max(jnp.abs(q_big_ref)) + 1e-6)
    assert rel_err < 0.1, f"bf16 path relative error too large: {rel_err}"

    print("KERNEL_OK")
</pallas_src>

<mosaic_0001>
module attributes {stable_mosaic.version = 11 : i64} {
  func.func @dueling_q_kernel(%arg0: i32, %arg1: memref<8x16xf32, #tpu.memory_space<vmem>>, %arg2: memref<16x128xf32, #tpu.memory_space<vmem>>, %arg3: memref<1x128xf32, #tpu.memory_space<vmem>>, %arg4: memref<128x256xf32, #tpu.memory_space<vmem>>, %arg5: memref<1x256xf32, #tpu.memory_space<vmem>>, %arg6: memref<128x128xf32, #tpu.memory_space<vmem>>, %arg7: memref<1x128xf32, #tpu.memory_space<vmem>>, %arg8: memref<1x128xf32, #tpu.memory_space<vmem>>, %arg9: memref<1x1xf32, #tpu.memory_space<vmem>>, %arg10: memref<8x4xf32, #tpu.memory_space<vmem>>) attributes {dimension_semantics = [#tpu.dimension_semantics<parallel>], iteration_bounds = array<i64: 1>, scalar_prefetch = 0 : i64, scratch_operands = 0 : i64, tpu.core_type = #tpu.core_type<tc>, window_params = [{transform_indices = @transform_0, window_bounds = array<i64: 8, 16>}, {pipeline_mode = #tpu.pipeline_mode<synchronous>, transform_indices = @transform_1, window_bounds = array<i64: 16, 128>}, {pipeline_mode = #tpu.pipeline_mode<synchronous>, transform_indices = @transform_2, window_bounds = array<i64: 1, 128>}, {pipeline_mode = #tpu.pipeline_mode<synchronous>, transform_indices = @transform_3, window_bounds = array<i64: 128, 256>}, {pipeline_mode = #tpu.pipeline_mode<synchronous>, transform_indices = @transform_4, window_bounds = array<i64: 1, 256>}, {pipeline_mode = #tpu.pipeline_mode<synchronous>, transform_indices = @transform_5, window_bounds = array<i64: 128, 128>}, {pipeline_mode = #tpu.pipeline_mode<synchronous>, transform_indices = @transform_6, window_bounds = array<i64: 1, 128>}, {pipeline_mode = #tpu.pipeline_mode<synchronous>, transform_indices = @transform_7, window_bounds = array<i64: 1, 128>}, {pipeline_mode = #tpu.pipeline_mode<synchronous>, transform_indices = @transform_8, window_bounds = array<i64: 1, 1>}, {transform_indices = @transform_9, window_bounds = array<i64: 8, 4>}]} {
    %c0 = arith.constant 0 : index
    %c0_0 = arith.constant 0 : index
    %0 = vector.load %arg1[%c0, %c0_0] : memref<8x16xf32, #tpu.memory_space<vmem>>, vector<8x16xf32>
    %c0_1 = arith.constant 0 : index
    %c0_2 = arith.constant 0 : index
    %1 = vector.load %arg2[%c0_1, %c0_2] : memref<16x128xf32, #tpu.memory_space<vmem>>, vector<16x128xf32>
    %cst = arith.constant dense<0.000000e+00> : vector<8x128xf32>
    %2 = tpu.matmul %0, %1, %cst {dimension_numbers = #tpu.dot_dimension_numbers<[1], [0], [0], [1], [0, 0, 1, 1], [], []>} : vector<8x16xf32>, vector<16x128xf32>, vector<8x128xf32> -> vector<8x128xf32>
    %c0_3 = arith.constant 0 : index
    %c0_4 = arith.constant 0 : index
    %3 = vector.load %arg3[%c0_3, %c0_4] : memref<1x128xf32, #tpu.memory_space<vmem>>, vector<1x128xf32>
    %4 = vector.broadcast %3 : vector<1x128xf32> to vector<8x128xf32>
    %5 = arith.addf %2, %4 : vector<8x128xf32>
    %cst_5 = arith.constant 0.000000e+00 : f32
    %6 = vector.broadcast %cst_5 : f32 to vector<8x128xf32>
    %7 = arith.maximumf %5, %6 : vector<8x128xf32>
    %c0_6 = arith.constant 0 : index
    %c0_7 = arith.constant 0 : index
    %8 = vector.load %arg4[%c0_6, %c0_7] : memref<128x256xf32, #tpu.memory_space<vmem>>, vector<128x256xf32>
    %cst_8 = arith.constant dense<0.000000e+00> : vector<8x256xf32>
    %9 = tpu.matmul %7, %8, %cst_8 {dimension_numbers = #tpu.dot_dimension_numbers<[1], [0], [0], [1], [0, 0, 1, 1], [], []>} : vector<8x128xf32>, vector<128x256xf32>, vector<8x256xf32> -> vector<8x256xf32>
    %c0_9 = arith.constant 0 : index
    %c0_10 = arith.constant 0 : index
    %10 = vector.load %arg5[%c0_9, %c0_10] : memref<1x256xf32, #tpu.memory_space<vmem>>, vector<1x256xf32>
    %11 = vector.broadcast %10 : vector<1x256xf32> to vector<8x256xf32>
    %12 = arith.addf %9, %11 : vector<8x256xf32>
    %cst_11 = arith.constant 0.000000e+00 : f32
    %13 = vector.broadcast %cst_11 : f32 to vector<8x256xf32>
    %14 = arith.maximumf %12, %13 : vector<8x256xf32>
    %15 = vector.extract_strided_slice %14 {offsets = [0, 0], sizes = [8, 128], strides = [1, 1]} : vector<8x256xf32> to vector<8x128xf32>
    %16 = vector.extract_strided_slice %14 {offsets = [0, 128], sizes = [8, 128], strides = [1, 1]} : vector<8x256xf32> to vector<8x128xf32>
    %c0_12 = arith.constant 0 : index
    %c0_13 = arith.constant 0 : index
    %17 = vector.load %arg6[%c0_12, %c0_13] : memref<128x128xf32, #tpu.memory_space<vmem>>, vector<128x128xf32>
    %cst_14 = arith.constant dense<0.000000e+00> : vector<8x128xf32>
    %18 = tpu.matmul %16, %17, %cst_14 {dimension_numbers = #tpu.dot_dimension_numbers<[1], [0], [0], [1], [0, 0, 1, 1], [], []>} : vector<8x128xf32>, vector<128x128xf32>, vector<8x128xf32> -> vector<8x128xf32>
    %c0_15 = arith.constant 0 : index
    %c0_16 = arith.constant 0 : index
    %19 = vector.load %arg7[%c0_15, %c0_16] : memref<1x128xf32, #tpu.memory_space<vmem>>, vector<1x128xf32>
    %20 = vector.broadcast %19 : vector<1x128xf32> to vector<8x128xf32>
    %21 = arith.addf %18, %20 : vector<8x128xf32>
    %c0_17 = arith.constant 0 : index
    %c0_18 = arith.constant 0 : index
    %22 = vector.load %arg8[%c0_17, %c0_18] : memref<1x128xf32, #tpu.memory_space<vmem>>, vector<1x128xf32>
    %23 = vector.broadcast %22 : vector<1x128xf32> to vector<8x128xf32>
    %24 = arith.mulf %15, %23 : vector<8x128xf32>
    %cst_19 = arith.constant dense<0.000000e+00> : vector<8xf32>
    %25 = vector.multi_reduction <add>, %24, %cst_19 [1] : vector<8x128xf32> to vector<8xf32>
    %26 = vector.shape_cast %25 : vector<8xf32> to vector<8x1xf32>
    %c0_20 = arith.constant 0 : index
    %c0_21 = arith.constant 0 : index
    %27 = vector.load %arg9[%c0_20, %c0_21] : memref<1x1xf32, #tpu.memory_space<vmem>>, vector<1x1xf32>
    %28 = vector.broadcast %27 : vector<1x1xf32> to vector<8x1xf32>
    %29 = arith.addf %26, %28 : vector<8x1xf32>
    %cst_22 = arith.constant dense<0.000000e+00> : vector<8xf32>
    %30 = vector.multi_reduction <add>, %21, %cst_22 [1] : vector<8x128xf32> to vector<8xf32>
    %31 = vector.shape_cast %30 : vector<8xf32> to vector<8x1xf32>
    %cst_23 = arith.constant 2.500000e-01 : f32
    %32 = vector.broadcast %cst_23 : f32 to vector<8x1xf32>
    %33 = arith.mulf %31, %32 : vector<8x1xf32>
    %34 = vector.extract_strided_slice %21 {offsets = [0, 0], sizes = [8, 4], strides = [1, 1]} : vector<8x128xf32> to vector<8x4xf32>
    %35 = vector.broadcast %29 : vector<8x1xf32> to vector<8x4xf32>
    %36 = arith.addf %35, %34 : vector<8x4xf32>
    %37 = vector.broadcast %33 : vector<8x1xf32> to vector<8x4xf32>
    %38 = arith.subf %36, %37 : vector<8x4xf32>
    %c0_24 = arith.constant 0 : index
    %c0_25 = arith.constant 0 : index
    %39 = vector.load %arg10[%c0_24, %c0_25] : memref<8x4xf32, #tpu.memory_space<vmem>>, vector<8x4xf32>
    tpu.vector_store %arg10[%c0_24, %c0_25], %38 {strides = array<i32>} : memref<8x4xf32, #tpu.memory_space<vmem>>, vector<8x4xf32>,
    return
  }
  func.func @transform_0(%arg0: i32) -> (i32, i32) {
    %c0_i32 = arith.constant 0 : i32
    %c0_i32_0 = arith.constant 0 : i32
    return %arg0, %c0_i32 : i32, i32
  }
  func.func @transform_1(%arg0: i32) -> (i32, i32) {
    %c0_i32 = arith.constant 0 : i32
    %c0_i32_0 = arith.constant 0 : i32
    %c0_i32_1 = arith.constant 0 : i32
    return %c0_i32, %c0_i32_0 : i32, i32
  }
  func.func @transform_2(%arg0: i32) -> (i32, i32) {
    %c0_i32 = arith.constant 0 : i32
    %c0_i32_0 = arith.constant 0 : i32
    %c0_i32_1 = arith.constant 0 : i32
    return %c0_i32, %c0_i32_0 : i32, i32
  }
  func.func @transform_3(%arg0: i32) -> (i32, i32) {
    %c0_i32 = arith.constant 0 : i32
    %c0_i32_0 = arith.constant 0 : i32
    %c0_i32_1 = arith.constant 0 : i32
    return %c0_i32, %c0_i32_0 : i32, i32
  }
  func.func @transform_4(%arg0: i32) -> (i32, i32) {
    %c0_i32 = arith.constant 0 : i32
    %c0_i32_0 = arith.constant 0 : i32
    %c0_i32_1 = arith.constant 0 : i32
    return %c0_i32, %c0_i32_0 : i32, i32
  }
  func.func @transform_5(%arg0: i32) -> (i32, i32) {
    %c0_i32 = arith.constant 0 : i32
    %c0_i32_0 = arith.constant 0 : i32
    %c0_i32_1 = arith.constant 0 : i32
    return %c0_i32, %c0_i32_0 : i32, i32
  }
  func.func @transform_6(%arg0: i32) -> (i32, i32) {
    %c0_i32 = arith.constant 0 : i32
    %c0_i32_0 = arith.constant 0 : i32
    %c0_i32_1 = arith.constant 0 : i32
    return %c0_i32, %c0_i32_0 : i32, i32
  }
  func.func @transform_7(%arg0: i32) -> (i32, i32) {
    %c0_i32 = arith.constant 0 : i32
    %c0_i32_0 = arith.constant 0 : i32
    %c0_i32_1 = arith.constant 0 : i32
    return %c0_i32, %c0_i32_0 : i32, i32
  }
  func.func @transform_8(%arg0: i32) -> (i32, i32) {
    %c0_i32 = arith.constant 0 : i32
    %c0_i32_0 = arith.constant 0 : i32
    %c0_i32_1 = arith.constant 0 : i32
    return %c0_i32, %c0_i32_0 : i32, i32
  }
  func.func @transform_9(%arg0: i32) -> (i32, i32) {
    %c0_i32 = arith.constant 0 : i32
    %c0_i32_0 = arith.constant 0 : i32
    return %arg0, %c0_i32 : i32, i32
  }
}

</mosaic_0001>

<llo_original>
// kernel: tpu_custom_call.1
$region0: #{tpu_custom_call.1}
  #allocation0 [shape = 'u32[]', space=smem, size = 0x4, offset = 0x4, fixed_abs, tag = 'smem constant byte address 0x4 - core index']
  #allocation1 [shape = 'u32[144,128]{1,0:T(1,128)}', space=vmem, size = 0x12000, scoped, tag = 'internal scratch']
  #allocation2 [shape = 'f32[1,1]{1,0:T(1,128)S(1)}', space=vmem, size = 0x200, scoped, tag = 'scoped memory for tpu_custom_call.1']
  %s0 = inlined_call_operand.hbm [shape: f32[8,16], index: 0, kind: input, shape index: {}]
  %s1 = inlined_call_operand.hbm [shape: f32[16,128], index: 1, kind: input, shape index: {}]
  %s2 = inlined_call_operand.vmem [shape: f32[1,128], index: 2, kind: input, shape index: {}]
  %s3 = inlined_call_operand.hbm [shape: f32[128,256], index: 3, kind: input, shape index: {}]
  %s4 = inlined_call_operand.vmem [shape: f32[1,256], index: 4, kind: input, shape index: {}]
  %s5 = inlined_call_operand.hbm [shape: f32[128,128], index: 5, kind: input, shape index: {}]
  %s6 = inlined_call_operand.vmem [shape: f32[1,128], index: 6, kind: input, shape index: {}]
  %s7 = inlined_call_operand.vmem [shape: f32[1,128], index: 7, kind: input, shape index: {}]
  %s8 = inlined_call_operand.<no memory space> [shape: f32[1,1], index: 8, kind: input, shape index: {}]
  %s9 = inlined_call_operand.vmem [shape: f32[8,4], index: 9, kind: output, shape index: {}]
  %s10 = sld [smem:[#allocation0]]
  $region62: #{tpu_custom_call.1} parent=0
    _
  %s12 = ssub.s32 1, %s10
  %s13 = scalar_select 0, %s12, %s10
  %v14 = vstv %s8
  %15 = vst [vmem:[#allocation2] sm:$0x1] %v14
  $region1: #{tpu_custom_call.1} parent=0
    #allocation3 [shape = 'u8[4096]{0}', space=vmem, size = 0x1000, scoped, tag = 'input window, operand 0, single buffered']
    #allocation4 [shape = 's32[1]{0}', space=sflag, size = 0x4, scoped, tag = 'scoped memory for tpu_custom_call.1']
    #allocation5 [shape = 'u8[8192]{0}', space=vmem, size = 0x2000, scoped, tag = 'input window, operand 1, single buffered']
    #allocation6 [shape = 's32[1]{0}', space=sflag, size = 0x4, scoped, tag = 'scoped memory for tpu_custom_call.1']
    #allocation7 [shape = 'u8[131072]{0}', space=vmem, size = 0x20000, scoped, tag = 'input window, operand 3, single buffered']
    #allocation8 [shape = 'u8[65536]{0}', space=vmem, size = 0x10000, scoped, tag = 'input window, operand 5, single buffered']
    #allocation9 [shape = 's32[1]{0}', space=sflag, size = 0x4, scoped, tag = 'scoped memory for tpu_custom_call.1']
    %16 = vsyncpa [#allocation4], 0
    %17 = vsyncpa [#allocation6], 0
    %18 = vsyncpa [#allocation9], 0
    // Predicated region
    $region2: #{tpu_custom_call.1} parent=1 // pred_check
      _
    $region3: #{tpu_custom_call.1} parent=1 // pred_check_branch
      %20 = sbr.rel (0) target = $region5
    $region4: #{tpu_custom_call.1} parent=1 // pred_region
      %s22 = ssub.s32 128, 128
      %23 = vsyncadd [#allocation4], %s22
      %s25 = sshll.u32 [#allocation3], 4
      %s26 = int_to_ptr.vmem [resolvable:$true] %s25
      %28 = dma.hbm_to_vmem [thread:$0]  %s0, 128, %s26, [#allocation4]
    $region5: #{tpu_custom_call.1} parent=1 // pred_fallthru
      _
    // Predicated region
    $region6: #{tpu_custom_call.1} parent=1 // pred_check
      _
    $region7: #{tpu_custom_call.1} parent=1 // pred_check_branch
      %30 = sbr.rel (0) target = $region9
    $region8: #{tpu_custom_call.1} parent=1 // pred_region
      %s32 = ssub.s32 256, 256
      %33 = vsyncadd [#allocation6], %s32
      %s34 = sshll.u32 [#allocation5], 4
      %s35 = int_to_ptr.vmem [resolvable:$true] %s34
      %40 = dma.hbm_to_vmem [thread:$0]  %s1, 256, %s35, [#allocation6], 128, 128, 8
    $region9: #{tpu_custom_call.1} parent=1 // pred_fallthru
      _
    // Predicated region
    $region10: #{tpu_custom_call.1} parent=1 // pred_check
      _
    $region11: #{tpu_custom_call.1} parent=1 // pred_check_branch
      %42 = sbr.rel (0) target = $region13
    $region12: #{tpu_custom_call.1} parent=1 // pred_region
      _
    $region13: #{tpu_custom_call.1} parent=1 // pred_fallthru
      _
    // Predicated region
    $region14: #{tpu_custom_call.1} parent=1 // pred_check
      _
    $region15: #{tpu_custom_call.1} parent=1 // pred_check_branch
      %44 = sbr.rel (0) target = $region17
    $region16: #{tpu_custom_call.1} parent=1 // pred_region
      %s46 = ssub.s32 4096, 4096
      %47 = vsyncadd [#allocation6], %s46
      %s48 = sshll.u32 [#allocation7], 4
      %s49 = int_to_ptr.vmem [resolvable:$true] %s48
      %54 = dma.hbm_to_vmem [thread:$0]  %s3, 4096, %s49, [#allocation6], 256, 256, 16
    $region17: #{tpu_custom_call.1} parent=1 // pred_fallthru
      _
    // Predicated region
    $region18: #{tpu_custom_call.1} parent=1 // pred_check
      _
    $region19: #{tpu_custom_call.1} parent=1 // pred_check_branch
      %56 = sbr.rel (0) target = $region21
    $region20: #{tpu_custom_call.1} parent=1 // pred_region
      _
    $region21: #{tpu_custom_call.1} parent=1 // pred_fallthru
      _
    // Predicated region
    $region22: #{tpu_custom_call.1} parent=1 // pred_check
      _
    $region23: #{tpu_custom_call.1} parent=1 // pred_check_branch
      %58 = sbr.rel (0) target = $region25
    $region24: #{tpu_custom_call.1} parent=1 // pred_region
      %s60 = ssub.s32 2048, 2048
      %61 = vsyncadd [#allocation9], %s60
      %s62 = sshll.u32 [#allocation8], 4
      %s63 = int_to_ptr.vmem [resolvable:$true] %s62
      %68 = dma.hbm_to_vmem [thread:$0]  %s5, 2048, %s63, [#allocation9], 128, 128, 8
    $region25: #{tpu_custom_call.1} parent=1 // pred_fallthru
      _
    // Predicated region
    $region26: #{tpu_custom_call.1} parent=1 // pred_check
      _
    $region27: #{tpu_custom_call.1} parent=1 // pred_check_branch
      %70 = sbr.rel (0) target = $region29
    $region28: #{tpu_custom_call.1} parent=1 // pred_region
      _
    $region29: #{tpu_custom_call.1} parent=1 // pred_fallthru
      _
    // Predicated region
    $region30: #{tpu_custom_call.1} parent=1 // pred_check
      _
    $region31: #{tpu_custom_call.1} parent=1 // pred_check_branch
      %72 = sbr.rel (0) target = $region33
    $region32: #{tpu_custom_call.1} parent=1 // pred_region
      _
    $region33: #{tpu_custom_call.1} parent=1 // pred_fallthru
      _
    // Predicated region
    $region34: #{tpu_custom_call.1} parent=1 // pred_check
      _
    $region35: #{tpu_custom_call.1} parent=1 // pred_check_branch
      %74 = sbr.rel (0) target = $region37
    $region36: #{tpu_custom_call.1} parent=1 // pred_region
      _
    $region37: #{tpu_custom_call.1} parent=1 // pred_fallthru
      _
    // Predicated region
    $region38: #{tpu_custom_call.1} parent=1 // pred_check
      _
    $region39: #{tpu_custom_call.1} parent=1 // pred_check_branch
      %76 = sbr.rel (0) target = $region41
    $region40: #{tpu_custom_call.1} parent=1 // pred_region
      %77 = dma.done [#allocation4], 128
    $region41: #{tpu_custom_call.1} parent=1 // pred_fallthru
      _
    // Predicated region
    $region42: #{tpu_custom_call.1} parent=1 // pred_check
      _
    $region43: #{tpu_custom_call.1} parent=1 // pred_check_branch
      %79 = sbr.rel (0) target = $region45
    $region44: #{tpu_custom_call.1} parent=1 // pred_region
      %80 = dma.done [#allocation6], 256
    $region45: #{tpu_custom_call.1} parent=1 // pred_fallthru
      _
    // Predicated region
    $region46: #{tpu_custom_call.1} parent=1 // pred_check
      _
    $region47: #{tpu_custom_call.1} parent=1 // pred_check_branch
      %82 = sbr.rel (0) target = $region49
    $region48: #{tpu_custom_call.1} parent=1 // pred_region
      %83 = dma.done [#allocation6], 4096
    $region49: #{tpu_custom_call.1} parent=1 // pred_fallthru
      _
    // Predicated region
    $region50: #{tpu_custom_call.1} parent=1 // pred_check
      _
    $region51: #{tpu_custom_call.1} parent=1 // pred_check_branch
      %85 = sbr.rel (0) target = $region53
    $region52: #{tpu_custom_call.1} parent=1 // pred_region
      %86 = dma.done [#allocation9], 2048
    $region53: #{tpu_custom_call.1} parent=1 // pred_fallthru
      _
    %v87 = vld [vmem:[#allocation3] sm:$0xff]
    %v88 = vld [vmem:[#allocation5] sm:$0xff]
    %v89 = vld [vmem:[#allocation5 + $0x8] sm:$0xff]
    %v90 = vld [vmem:[%s2] sm:$0x1]
    %v92 = vlaneseq
    %v93 = vshrl.u32 %v92, 7
    %v94 = vsub.s32 0, %v93
    %v95 = vrot.slane %v90, %v94
    %vm97 = vcmask 130048
    %v99 = vsel %vm97, %v87, 0
    %101 = vmatprep.subr.mxu0 0.0
    %102 = vmatpush1.msra.mxu0 0.0
    %103 = vmatprep.subr.mxu0 0.0
    %104 = vmatpush1.msra.mxu0 0.0
    %105 = vmatprep.subr.mxu0 0.0
    %106 = vmatpush1.msra.mxu0 0.0
    %107 = vmatprep.subr.mxu0 0.0
    %108 = vmatpush1.msra.mxu0 0.0
    %109 = vmatprep.subr.mxu0 0.0
    %110 = vmatpush1.msra.mxu0 0.0
    %111 = vmatprep.subr.mxu0 0.0
    %112 = vmatpush1.msra.mxu0 0.0
    %113 = vmatprep.subr.mxu0 0.0
    %114 = vmatpush1.msra.mxu0 0.0
    %115 = vmatprep.subr.mxu0 0.0
    %116 = vmatpush1.msra.mxu0 0.0
    %117 = vmatprep.subr.mxu0 0.0
    %118 = vmatpush1.msra.mxu0 0.0
    %119 = vmatprep.subr.mxu0 0.0
    %120 = vmatpush1.msra.mxu0 0.0
    %121 = vmatprep.subr.mxu0 0.0
    %122 = vmatpush1.msra.mxu0 0.0
    %123 = vmatprep.subr.mxu0 0.0
    %124 = vmatpush1.msra.mxu0 0.0
    %125 = vmatprep.subr.mxu0 0.0
    %126 = vmatpush1.msra.mxu0 0.0
    %127 = vmatprep.subr.mxu0 0.0
    %128 = vmatpush1.msra.mxu0 0.0
    %129 = vmatprep.subr.mxu0 0.0
    %130 = vmatpush1.msra.mxu0 %v89
    %131 = vmatprep.subr.mxu0 0.0
    %132 = vmatpush1.msra.mxu0 %v88
    %133 = vmatprep.subr.mxu0 0.0
    %134 = vmatpush2.msra.mxu0 0.0
    %135 = vmatprep.subr.mxu0 0.0
    %136 = vmatpush2.msra.mxu0 0.0
    %137 = vmatprep.subr.mxu0 0.0
    %138 = vmatpush2.msra.mxu0 0.0
    %139 = vmatprep.subr.mxu0 0.0
    %140 = vmatpush2.msra.mxu0 0.0
    %141 = vmatprep.subr.mxu0 0.0
    %142 = vmatpush2.msra.mxu0 0.0
    %143 = vmatprep.subr.mxu0 0.0
    %144 = vmatpush2.msra.mxu0 0.0
    %145 = vmatprep.subr.mxu0 0.0
    %146 = vmatpush2.msra.mxu0 0.0
    %147 = vmatprep.subr.mxu0 0.0
    %148 = vmatpush2.msra.mxu0 0.0
    %149 = vmatprep.subr.mxu0 0.0
    %150 = vmatpush2.msra.mxu0 0.0
    %151 = vmatprep.subr.mxu0 0.0
    %152 = vmatpush2.msra.mxu0 0.0
    %153 = vmatprep.subr.mxu0 0.0
    %154 = vmatpush2.msra.mxu0 0.0
    %155 = vmatprep.subr.mxu0 0.0
    %156 = vmatpush2.msra.mxu0 0.0
    %157 = vmatprep.subr.mxu0 0.0
    %158 = vmatpush2.msra.mxu0 0.0
    %159 = vmatprep.subr.mxu0 0.0
    %160 = vmatpush2.msra.mxu0 0.0
    %161 = vmatprep.subr.mxu0 0.0
    %162 = vmatpush2.msra.mxu0 0.0
    %163 = vmatprep.subr.mxu0 0.0
    %164 = vmatpush2.msra.mxu0 0.0
    %165 = vmatprep.mubr.f32.mxu0 0.0
    %166 = vmatmul.mubr.f32.gmra.mxu0 %v99
    %v167 = vpop.f32.mrf.mxu0
    %v168 = vadd.f32 %v95, %v167
    %v169 = vpop.f32.mrf.mxu0
    %170 = vdwg.mxu0
    %v171 = vmax.f32 %v168, 0.0
    %v172 = vld [vmem:[#allocation7] sm:$0xff]
    %v173 = vld [vmem:[#allocation7 + $0x8] sm:$0xff]
    %v174 = vld [vmem:[#allocation7 + $0x10] sm:$0xff]
    %v175 = vld [vmem:[#allocation7 + $0x18] sm:$0xff]
    %v176 = vld [vmem:[#allocation7 + $0x20] sm:$0xff]
    %v177 = vld [vmem:[#allocation7 + $0x28] sm:$0xff]
    %v178 = vld [vmem:[#allocation7 + $0x30] sm:$0xff]
    %v179 = vld [vmem:[#allocation7 + $0x38] sm:$0xff]
    %v180 = vld [vmem:[#allocation7 + $0x40] sm:$0xff]
    %v181 = vld [vmem:[#allocation7 + $0x48] sm:$0xff]
    %v182 = vld [vmem:[#allocation7 + $0x50] sm:$0xff]
    %v183 = vld [vmem:[#allocation7 + $0x58] sm:$0xff]
    %v184 = vld [vmem:[#allocation7 + $0x60] sm:$0xff]
    %v185 = vld [vmem:[#allocation7 + $0x68] sm:$0xff]
    %v186 = vld [vmem:[#allocation7 + $0x70] sm:$0xff]
    %v187 = vld [vmem:[#allocation7 + $0x78] sm:$0xff]
    %v188 = vld [vmem:[#allocation7 + $0x80] sm:$0xff]
    %v189 = vld [vmem:[#allocation7 + $0x88] sm:$0xff]
    %v190 = vld [vmem:[#allocation7 + $0x90] sm:$0xff]
    %v191 = vld [vmem:[#allocation7 + $0x98] sm:$0xff]
    %v192 = vld [vmem:[#allocation7 + $0xa0] sm:$0xff]
    %v193 = vld [vmem:[#allocation7 + $0xa8] sm:$0xff]
    %v194 = vld [vmem:[#allocation7 + $0xb0] sm:$0xff]
    %v195 = vld [vmem:[#allocation7 + $0xb8] sm:$0xff]
    %v196 = vld [vmem:[#allocation7 + $0xc0] sm:$0xff]
    %v197 = vld [vmem:[#allocation7 + $0xc8] sm:$0xff]
    %v198 = vld [vmem:[#allocation7 + $0xd0] sm:$0xff]
    %v199 = vld [vmem:[#allocation7 + $0xd8] sm:$0xff]
    %v200 = vld [vmem:[#allocation7 + $0xe0] sm:$0xff]
    %v201 = vld [vmem:[#allocation7 + $0xe8] sm:$0xff]
    %v202 = vld [vmem:[#allocation7 + $0xf0] sm:$0xff]
    %v203 = vld [vmem:[#allocation7 + $0xf8] sm:$0xff]
    %v204 = vld [vmem:[%s4] sm:$0x3]
    %v206 = vlaneseq
    %v207 = vshrl.u32 %v206, 7
    %v208 = vsub.s32 0, %v207
    %v209 = vrot.slane %v204, %v208
    %v210 = vlaneseq
    %v211 = vshrl.u32 %v210, 7
    %v212 = vsub.s32 1, %v211
    %v213 = vrot.slane %v204, %v212
    %216 = vmatprep.subr.mxu0 %v203
    %217 = vmatpush1.msra.mxu0 %v202
    %218 = vmatprep.subr.mxu0 %v201
    %219 = vmatpush1.msra.mxu0 %v200
    %220 = vmatprep.subr.mxu0 %v199
    %221 = vmatpush1.msra.mxu0 %v198
    %222 = vmatprep.subr.mxu0 %v197
    %223 = vmatpush1.msra.mxu0 %v196
    %224 = vmatprep.subr.mxu0 %v195
    %225 = vmatpush1.msra.mxu0 %v194
    %226 = vmatprep.subr.mxu0 %v193
    %227 = vmatpush1.msra.mxu0 %v192
    %228 = vmatprep.subr.mxu0 %v191
    %229 = vmatpush1.msra.mxu0 %v190
    %230 = vmatprep.subr.mxu0 %v189
    %231 = vmatpush1.msra.mxu0 %v188
    %232 = vmatprep.subr.mxu0 %v187
    %233 = vmatpush1.msra.mxu0 %v186
    %234 = vmatprep.subr.mxu0 %v185
    %235 = vmatpush1.msra.mxu0 %v184
    %236 = vmatprep.subr.mxu0 %v183
    %237 = vmatpush1.msra.mxu0 %v182
    %238 = vmatprep.subr.mxu0 %v181
    %239 = vmatpush1.msra.mxu0 %v180
    %240 = vmatprep.subr.mxu0 %v179
    %241 = vmatpush1.msra.mxu0 %v178
    %242 = vmatprep.subr.mxu0 %v177
    %243 = vmatpush1.msra.mxu0 %v176
    %244 = vmatprep.subr.mxu0 %v175
    %245 = vmatpush1.msra.mxu0 %v174
    %246 = vmatprep.subr.mxu0 %v173
    %247 = vmatpush1.msra.mxu0 %v172
    %248 = vmatprep.subr.mxu0 0.0
    %249 = vmatpush2.msra.mxu0 0.0
    %250 = vmatprep.subr.mxu0 0.0
    %251 = vmatpush2.msra.mxu0 0.0
    %252 = vmatprep.subr.mxu0 0.0
    %253 = vmatpush2.msra.mxu0 0.0
    %254 = vmatprep.subr.mxu0 0.0
    %255 = vmatpush2.msra.mxu0 0.0
    %256 = vmatprep.subr.mxu0 0.0
    %257 = vmatpush2.msra.mxu0 0.0
    %258 = vmatprep.subr.mxu0 0.0
    %259 = vmatpush2.msra.mxu0 0.0
    %260 = vmatprep.subr.mxu0 0.0
    %261 = vmatpush2.msra.mxu0 0.0
    %262 = vmatprep.subr.mxu0 0.0
    %263 = vmatpush2.msra.mxu0 0.0
    %264 = vmatprep.subr.mxu0 0.0
    %265 = vmatpush2.msra.mxu0 0.0
    %266 = vmatprep.subr.mxu0 0.0
    %267 = vmatpush2.msra.mxu0 0.0
    %268 = vmatprep.subr.mxu0 0.0
    %269 = vmatpush2.msra.mxu0 0.0
    %270 = vmatprep.subr.mxu0 0.0
    %271 = vmatpush2.msra.mxu0 0.0
    %272 = vmatprep.subr.mxu0 0.0
    %273 = vmatpush2.msra.mxu0 0.0
    %274 = vmatprep.subr.mxu0 0.0
    %275 = vmatpush2.msra.mxu0 0.0
    %276 = vmatprep.subr.mxu0 0.0
    %277 = vmatpush2.msra.mxu0 0.0
    %278 = vmatprep.subr.mxu0 0.0
    %279 = vmatpush2.msra.mxu0 0.0
    %280 = vmatprep.mubr.f32.mxu0 0.0
    %281 = vmatmul.mubr.f32.gmra.mxu0 %v171
    %v282 = vpop.f32.mrf.mxu0
    %v283 = vadd.f32 %v209, %v282
    %v284 = vpop.f32.mrf.mxu0
    %v285 = vadd.f32 %v213, %v284
    %286 = vdwg.mxu0
    %v287 = vmax.f32 %v283, 0.0
    %v288 = vmax.f32 %v285, 0.0
    %v289 = vld [vmem:[#allocation8] sm:$0xff]
    %v290 = vld [vmem:[#allocation8 + $0x8] sm:$0xff]
    %v291 = vld [vmem:[#allocation8 + $0x10] sm:$0xff]
    %v292 = vld [vmem:[#allocation8 + $0x18] sm:$0xff]
    %v293 = vld [vmem:[#allocation8 + $0x20] sm:$0xff]
    %v294 = vld [vmem:[#allocation8 + $0x28] sm:$0xff]
    %v295 = vld [vmem:[#allocation8 + $0x30] sm:$0xff]
    %v296 = vld [vmem:[#allocation8 + $0x38] sm:$0xff]
    %v297 = vld [vmem:[#allocation8 + $0x40] sm:$0xff]
    %v298 = vld [vmem:[#allocation8 + $0x48] sm:$0xff]
    %v299 = vld [vmem:[#allocation8 + $0x50] sm:$0xff]
    %v300 = vld [vmem:[#allocation8 + $0x58] sm:$0xff]
    %v301 = vld [vmem:[#allocation8 + $0x60] sm:$0xff]
    %v302 = vld [vmem:[#allocation8 + $0x68] sm:$0xff]
    %v303 = vld [vmem:[#allocation8 + $0x70] sm:$0xff]
    %v304 = vld [vmem:[#allocation8 + $0x78] sm:$0xff]
    %v305 = vld [vmem:[%s6] sm:$0x1]
    %v307 = vlaneseq
    %v308 = vshrl.u32 %v307, 7
    %v309 = vsub.s32 0, %v308
    %v310 = vrot.slane %v305, %v309
    %312 = vmatprep.subr.mxu0 0.0
    %313 = vmatpush1.msra.mxu0 %v304
    %314 = vmatprep.subr.mxu0 0.0
    %315 = vmatpush1.msra.mxu0 %v303
    %316 = vmatprep.subr.mxu0 0.0
    %317 = vmatpush1.msra.mxu0 %v302
    %318 = vmatprep.subr.mxu0 0.0
    %319 = vmatpush1.msra.mxu0 %v301
    %320 = vmatprep.subr.mxu0 0.0
    %321 = vmatpush1.msra.mxu0 %v300
    %322 = vmatprep.subr.mxu0 0.0
    %323 = vmatpush1.msra.mxu0 %v299
    %324 = vmatprep.subr.mxu0 0.0
    %325 = vmatpush1.msra.mxu0 %v298
    %326 = vmatprep.subr.mxu0 0.0
    %327 = vmatpush1.msra.mxu0 %v297
    %328 = vmatprep.subr.mxu0 0.0
    %329 = vmatpush1.msra.mxu0 %v296
    %330 = vmatprep.subr.mxu0 0.0
    %331 = vmatpush1.msra.mxu0 %v295
    %332 = vmatprep.subr.mxu0 0.0
    %333 = vmatpush1.msra.mxu0 %v294
    %334 = vmatprep.subr.mxu0 0.0
    %335 = vmatpush1.msra.mxu0 %v293
    %336 = vmatprep.subr.mxu0 0.0
    %337 = vmatpush1.msra.mxu0 %v292
    %338 = vmatprep.subr.mxu0 0.0
    %339 = vmatpush1.msra.mxu0 %v291
    %340 = vmatprep.subr.mxu0 0.0
    %341 = vmatpush1.msra.mxu0 %v290
    %342 = vmatprep.subr.mxu0 0.0
    %343 = vmatpush1.msra.mxu0 %v289
    %344 = vmatprep.subr.mxu0 0.0
    %345 = vmatpush2.msra.mxu0 0.0
    %346 = vmatprep.subr.mxu0 0.0
    %347 = vmatpush2.msra.mxu0 0.0
    %348 = vmatprep.subr.mxu0 0.0
    %349 = vmatpush2.msra.mxu0 0.0
    %350 = vmatprep.subr.mxu0 0.0
    %351 = vmatpush2.msra.mxu0 0.0
    %352 = vmatprep.subr.mxu0 0.0
    %353 = vmatpush2.msra.mxu0 0.0
    %354 = vmatprep.subr.mxu0 0.0
    %355 = vmatpush2.msra.mxu0 0.0
    %356 = vmatprep.subr.mxu0 0.0
    %357 = vmatpush2.msra.mxu0 0.0
    %358 = vmatprep.subr.mxu0 0.0
    %359 = vmatpush2.msra.mxu0 0.0
    %360 = vmatprep.subr.mxu0 0.0
    %361 = vmatpush2.msra.mxu0 0.0
    %362 = vmatprep.subr.mxu0 0.0
    %363 = vmatpush2.msra.mxu0 0.0
    %364 = vmatprep.subr.mxu0 0.0
    %365 = vmatpush2.msra.mxu0 0.0
    %366 = vmatprep.subr.mxu0 0.0
    %367 = vmatpush2.msra.mxu0 0.0
    %368 = vmatprep.subr.mxu0 0.0
    %369 = vmatpush2.msra.mxu0 0.0
    %370 = vmatprep.subr.mxu0 0.0
    %371 = vmatpush2.msra.mxu0 0.0
    %372 = vmatprep.subr.mxu0 0.0
    %373 = vmatpush2.msra.mxu0 0.0
    %374 = vmatprep.subr.mxu0 0.0
    %375 = vmatpush2.msra.mxu0 0.0
    %376 = vmatprep.mubr.f32.mxu0 0.0
    %377 = vmatmul.mubr.f32.gmra.mxu0 %v288
    %v378 = vpop.f32.mrf.mxu0
    %v379 = vadd.f32 %v310, %v378
    %v380 = vpop.f32.mrf.mxu0
    %381 = vdwg.mxu0
    %v382 = vld [vmem:[%s7] sm:$0x1]
    %v384 = vlaneseq
    %v385 = vshrl.u32 %v384, 7
    %v386 = vsub.s32 0, %v385
    %v387 = vrot.slane %v382, %v386
    %v389 = vmul.f32 %v287, %v387
    %390 = vadd.xlane.f32.xlu0 %v389
    %v391 = vpop.xlane.xlu0 %390
    %v392 = vld [vmem:[#allocation2] sm:$0x1]
    %v394 = vlaneseq
    %v395 = vshrl.u32 %v394, 7
    %v396 = vsub.s32 0, %v395
    %v397 = vrot.slane %v392, %v396
    %v399 = vadd.f32 %v391, %v397
    %400 = vadd.xlane.f32.xlu0 %v379
    %v401 = vpop.xlane.xlu0 %400
    %v402 = vmul.f32 %v401, 0.25
    %404 = vset.pattern.permute.xlu0 0
    %405 = vperm.xlu0 %404, %v399
    %v406 = vpop.permute.xlu0 %405
    %v408 = vadd.f32 %v406, %v379
    %v409 = vsub.f32 %v408, %v402
    %vm410 = vcmask 31744
    %411 = vst.msk [vmem:[%s9] sm:$0xff] %vm410, %v409
    // Predicated region
    $region54: #{tpu_custom_call.1} parent=1 // pred_check
      _
    $region55: #{tpu_custom_call.1} parent=1 // pred_check_branch
      %413 = sbr.rel (0) target = $region57
    $region56: #{tpu_custom_call.1} parent=1 // pred_region
      _
    $region57: #{tpu_custom_call.1} parent=1 // pred_fallthru
      _
    // Predicated region
    $region58: #{tpu_custom_call.1} parent=1 // pred_check
      _
    $region59: #{tpu_custom_call.1} parent=1 // pred_check_branch
      %415 = sbr.rel (0) target = $region61
    $region60: #{tpu_custom_call.1} parent=1 // pred_region
      _
    $region61: #{tpu_custom_call.1} parent=1 // pred_fallthru
      _
    %416 = vsyncpa [#allocation4], 1
    %417 = vsyncpa [#allocation6], 1
    %418 = vsyncpa [#allocation9], 1

</llo_original>
